<compile_context>
chip_gen: v7x
topology: tpu7x:2x2x1
jax: 0.10.0
libtpu: 0.0.40
codegen_flags: <defaults>
</compile_context>

<pallas_src>
import jax
import jax.numpy as jnp
from jax.experimental import pallas as pl
from jax.experimental.pallas import tpu as pltpu


def dan_kernel(counts_ref, emb_ref, w1_ref, b1_ref, w2_ref, b2_ref, w3_ref,
               b3_ref, out_ref):
    # counts_ref: [block_b, vocab_pad] bf16 per-sentence token counts
    # emb_ref   : [vocab_pad, d_emb]   bf16 embedding table pre-scaled by 1/seq
    # w*_ref    : bf16 [in, out] (pre-transposed vs. torch); b*_ref: f32 [1, out]
    # out_ref   : [block_b, d_out_pad] f32 log-probs (padded lanes hold ~-1e30)

    # Embedding gather + mean-pool as one MXU matmul: counts @ (table / seq).
    pooled = jnp.dot(counts_ref[...], emb_ref[...],
                     preferred_element_type=jnp.float32)             # [block_b, d_emb]

    h = jnp.dot(pooled.astype(jnp.bfloat16), w1_ref[...],
                preferred_element_type=jnp.float32) + b1_ref[...]     # fc1
    h = jnp.maximum(h, 0.0)                                           # relu (f32 VPU)

    h = jnp.dot(h.astype(jnp.bfloat16), w2_ref[...],
                preferred_element_type=jnp.float32) + b2_ref[...]     # hidden1
    # TODO(synk): nn.Dropout(p=0.2) treated as eval-mode identity (no RNG mask).
    h = jnp.maximum(h, 0.0)                                           # relu

    logits = jnp.dot(h.astype(jnp.bfloat16), w3_ref[...],
                     preferred_element_type=jnp.float32) + b3_ref[...]  # hidden2

    # Log-softmax per sentence over the last axis (== PyTorch LogSoftmax(dim=0)
    # applied to a single sentence's 1-D logits).  Padded logit lanes carry a
    # -1e30 bias, so exp(pad - m) == 0 in f32 and the result over the real
    # d_out lanes is exact.
    m = jnp.max(logits, axis=-1, keepdims=True)
    lse = jnp.log(jnp.sum(jnp.exp(logits - m), axis=-1, keepdims=True)) + m
    out_ref[...] = logits - lse


def feedforward_forward(token_indices, emb_table, params, *, block_b=512):
    """token_indices: int32 [B, seq]; emb_table: f32 [vocab, d_emb]; params: dict."""
    B, seq = token_indices.shape
    vocab, d_emb = emb_table.shape
    d_hidden = params["w1"].shape[1]
    d_out = params["w3"].shape[1]

    lane = 128
    vocab_pad = pl.cdiv(vocab, lane) * lane
    d_out_pad = pl.cdiv(d_out, lane) * lane

    # --- glue: bag-of-words counts (replaces the [B, seq, d_emb] gather) -------
    # counts[b, v] = #occurrences of token v in sentence b (small ints, exact in
    # bf16).  Tokens only take values in [0, vocab) so padded columns stay zero.
    # TODO(synk): for large vocabularies the dense counts matrix / VMEM-resident
    # table stops paying off; switch to an in-kernel index gather instead.
    one_hot = (token_indices[:, :, None] == jnp.arange(vocab_pad)[None, None, :])
    counts = jnp.sum(one_hot, axis=1, dtype=jnp.int32).astype(jnp.bfloat16)  # [B, vocab_pad]

    # --- one-time parameter prep ------------------------------------------------
    # Fold the 1/seq mean into the frozen embedding table; cast matmul operands
    # to bf16; pad w3/b3 out to 128 lanes (pad bias -1e30 for exact softmax).
    emb_scaled = jnp.zeros((vocab_pad, d_emb), jnp.bfloat16).at[:vocab, :].set(
        (emb_table.astype(jnp.float32) * (1.0 / seq)).astype(jnp.bfloat16))
    w1 = params["w1"].astype(jnp.bfloat16)
    w2 = params["w2"].astype(jnp.bfloat16)
    w3 = jnp.zeros((d_hidden, d_out_pad), jnp.bfloat16).at[:, :d_out].set(
        params["w3"].astype(jnp.bfloat16))
    b1 = params["b1"].astype(jnp.float32).reshape(1, d_hidden)
    b2 = params["b2"].astype(jnp.float32).reshape(1, d_hidden)
    b3 = jnp.full((1, d_out_pad), -1e30, jnp.float32).at[:, :d_out].set(
        params["b3"].astype(jnp.float32).reshape(-1))

    # --- batch tiling -------------------------------------------------------------
    block_b = max(8, pl.cdiv(block_b, 8) * 8)
    block_b = min(block_b, pl.cdiv(B, 8) * 8)
    # Keep >= 4 grid steps (>= 2 per v7x TensorCore) while blocks stay MXU-sized.
    while block_b >= 256 and pl.cdiv(B, block_b) < 4:
        block_b //= 2
    b_pad = pl.cdiv(B, block_b) * block_b
    if b_pad != B:
        counts = jnp.pad(counts, ((0, b_pad - B), (0, 0)))
    grid = (b_pad // block_b,)

    out_padded = pl.pallas_call(
        dan_kernel,
        out_shape=jax.ShapeDtypeStruct((b_pad, d_out_pad), jnp.float32),
        grid=grid,
        in_specs=[
            pl.BlockSpec((block_b, vocab_pad), lambda i: (i, 0)),     # counts (streamed)
            pl.BlockSpec((vocab_pad, d_emb), lambda i: (0, 0)),       # emb table (resident)
            pl.BlockSpec((d_emb, d_hidden), lambda i: (0, 0)),        # w1 (resident)
            pl.BlockSpec((1, d_hidden), lambda i: (0, 0)),            # b1
            pl.BlockSpec((d_hidden, d_hidden), lambda i: (0, 0)),     # w2 (resident)
            pl.BlockSpec((1, d_hidden), lambda i: (0, 0)),            # b2
            pl.BlockSpec((d_hidden, d_out_pad), lambda i: (0, 0)),    # w3 (padded, resident)
            pl.BlockSpec((1, d_out_pad), lambda i: (0, 0)),           # b3 (padded)
        ],
        out_specs=pl.BlockSpec((block_b, d_out_pad), lambda i: (i, 0)),
        compiler_params=pltpu.CompilerParams(
            # batch axis is embarrassingly parallel -> v7x's 2 TCs split it;
            # harmless on single-TC v5e/v6e.
            dimension_semantics=("parallel",),
        ),
    )(counts, emb_scaled, w1, b1, w2, b2, w3, b3)

    # Drop batch padding and the lane padding of the logits.
    return out_padded[:B, :d_out]


def xavier_uniform(key, shape):
    fan_in, fan_out = shape
    limit = jnp.sqrt(6.0 / (fan_in + fan_out))
    return jax.random.uniform(key, shape, jnp.float32, -limit, limit)


if __name__ == "__main__":
    # Small deterministic setup: lane-aligned d_emb / d_hidden, a batch of B
    # sentences of fixed length seq.
    vocab, d_emb, d_hidden, d_out = 50, 128, 128, 2
    B, seq = 256, 8

    key = jax.random.PRNGKey(0)
    k_emb, k1, k2, k3, kb1, kb2, kb3, k_idx = jax.random.split(key, 8)

    emb_table = jax.random.normal(k_emb, (vocab, d_emb), jnp.float32)
    # padding_idx=0: row 0 is the (frozen, zero) padding embedding.
    emb_table = emb_table.at[0].set(0.0)

    params = {
        # weights stored as [in, out] (transpose of PyTorch nn.Linear.weight)
        "w1": xavier_uniform(k1, (d_emb, d_hidden)),
        "b1": jax.random.uniform(kb1, (1, d_hidden), jnp.float32, -0.1, 0.1),
        "w2": xavier_uniform(k2, (d_hidden, d_hidden)),
        "b2": jax.random.uniform(kb2, (1, d_hidden), jnp.float32, -0.1, 0.1),
        "w3": xavier_uniform(k3, (d_hidden, d_out)),
        "b3": jax.random.uniform(kb3, (1, d_out), jnp.float32, -0.1, 0.1),
    }

    # A batch of sentences of token indices (the word->index lookup glue).
    token_indices = jax.random.randint(k_idx, (B, seq), 0, vocab, jnp.int32)

    out = jax.jit(feedforward_forward)(token_indices, emb_table, params)
    out = jax.block_until_ready(out)
    assert out.shape == (B, d_out)

    # Log-probs must normalize per sentence.
    assert jnp.allclose(jnp.sum(jnp.exp(out), axis=-1), 1.0, atol=1e-3)

    # (1) bf16-matched reference: identical casts to the kernel -> tight check.
    def bf(x):
        return x.astype(jnp.bfloat16).astype(jnp.float32)

    cnt = jnp.sum((token_indices[:, :, None] == jnp.arange(vocab)[None, None, :]),
                  axis=1, dtype=jnp.int32).astype(jnp.float32)
    pooled_m = bf(cnt) @ bf(emb_table * (1.0 / seq))
    h_m = jnp.maximum(bf(pooled_m) @ bf(params["w1"]) + params["b1"], 0.0)
    h_m = jnp.maximum(bf(h_m) @ bf(params["w2"]) + params["b2"], 0.0)
    logits_m = bf(h_m) @ bf(params["w3"]) + params["b3"]
    ref_bf16 = jax.nn.log_softmax(logits_m, axis=-1)
    assert jnp.allclose(out, ref_bf16, atol=1e-2, rtol=1e-2)

    # (2) f32 reference with the original module's (eval-mode) semantics:
    # looser sanity bound covering the intentional bf16 streaming error.
    embs_ref = jnp.take(emb_table, token_indices.reshape(-1), axis=0)
    x_ref = embs_ref.reshape(B, seq, d_emb).mean(axis=1)
    h_ref = jnp.maximum(x_ref @ params["w1"] + params["b1"], 0.0)
    h_ref = jnp.maximum(h_ref @ params["w2"] + params["b2"], 0.0)
    logits_ref = h_ref @ params["w3"] + params["b3"]
    ref_f32 = jax.nn.log_softmax(logits_ref, axis=-1)
    assert jnp.allclose(out, ref_f32, atol=0.1, rtol=0.1)

    print("KERNEL_OK")
</pallas_src>

<mosaic_0001>
module attributes {stable_mosaic.version = 11 : i64} {
  func.func @dan_kernel(%arg0: i32, %arg1: memref<128x128xbf16, #tpu.memory_space<vmem>>, %arg2: memref<128x128xbf16, #tpu.memory_space<vmem>>, %arg3: memref<128x128xbf16, #tpu.memory_space<vmem>>, %arg4: memref<1x128xf32, #tpu.memory_space<vmem>>, %arg5: memref<128x128xbf16, #tpu.memory_space<vmem>>, %arg6: memref<1x128xf32, #tpu.memory_space<vmem>>, %arg7: memref<128x128xbf16, #tpu.memory_space<vmem>>, %arg8: memref<1x128xf32, #tpu.memory_space<vmem>>, %arg9: memref<128x128xf32, #tpu.memory_space<vmem>>) attributes {dimension_semantics = [#tpu.dimension_semantics<parallel>], iteration_bounds = array<i64: 2>, scalar_prefetch = 0 : i64, scratch_operands = 0 : i64, tpu.core_type = #tpu.core_type<tc>, window_params = [{transform_indices = @transform_0, window_bounds = array<i64: 128, 128>}, {pipeline_mode = #tpu.pipeline_mode<synchronous>, transform_indices = @transform_1, window_bounds = array<i64: 128, 128>}, {pipeline_mode = #tpu.pipeline_mode<synchronous>, transform_indices = @transform_2, window_bounds = array<i64: 128, 128>}, {pipeline_mode = #tpu.pipeline_mode<synchronous>, transform_indices = @transform_3, window_bounds = array<i64: 1, 128>}, {pipeline_mode = #tpu.pipeline_mode<synchronous>, transform_indices = @transform_4, window_bounds = array<i64: 128, 128>}, {pipeline_mode = #tpu.pipeline_mode<synchronous>, transform_indices = @transform_5, window_bounds = array<i64: 1, 128>}, {pipeline_mode = #tpu.pipeline_mode<synchronous>, transform_indices = @transform_6, window_bounds = array<i64: 128, 128>}, {pipeline_mode = #tpu.pipeline_mode<synchronous>, transform_indices = @transform_7, window_bounds = array<i64: 1, 128>}, {transform_indices = @transform_8, window_bounds = array<i64: 128, 128>}]} {
    %c0 = arith.constant 0 : index
    %c0_0 = arith.constant 0 : index
    %0 = vector.load %arg1[%c0, %c0_0] : memref<128x128xbf16, #tpu.memory_space<vmem>>, vector<128x128xbf16>
    %c0_1 = arith.constant 0 : index
    %c0_2 = arith.constant 0 : index
    %1 = vector.load %arg2[%c0_1, %c0_2] : memref<128x128xbf16, #tpu.memory_space<vmem>>, vector<128x128xbf16>
    %cst = arith.constant dense<0.000000e+00> : vector<128x128xf32>
    %2 = tpu.matmul %0, %1, %cst {dimension_numbers = #tpu.dot_dimension_numbers<[1], [0], [0], [1], [0, 0, 1, 1], [], []>} : vector<128x128xbf16>, vector<128x128xbf16>, vector<128x128xf32> -> vector<128x128xf32>
    %3 = arith.truncf %2 : vector<128x128xf32> to vector<128x128xbf16>
    %c0_3 = arith.constant 0 : index
    %c0_4 = arith.constant 0 : index
    %4 = vector.load %arg3[%c0_3, %c0_4] : memref<128x128xbf16, #tpu.memory_space<vmem>>, vector<128x128xbf16>
    %cst_5 = arith.constant dense<0.000000e+00> : vector<128x128xf32>
    %5 = tpu.matmul %3, %4, %cst_5 {dimension_numbers = #tpu.dot_dimension_numbers<[1], [0], [0], [1], [0, 0, 1, 1], [], []>} : vector<128x128xbf16>, vector<128x128xbf16>, vector<128x128xf32> -> vector<128x128xf32>
    %c0_6 = arith.constant 0 : index
    %c0_7 = arith.constant 0 : index
    %6 = vector.load %arg4[%c0_6, %c0_7] : memref<1x128xf32, #tpu.memory_space<vmem>>, vector<1x128xf32>
    %7 = vector.broadcast %6 : vector<1x128xf32> to vector<128x128xf32>
    %8 = arith.addf %5, %7 : vector<128x128xf32>
    %cst_8 = arith.constant 0.000000e+00 : f32
    %9 = vector.broadcast %cst_8 : f32 to vector<128x128xf32>
    %10 = arith.maximumf %8, %9 : vector<128x128xf32>
    %11 = arith.truncf %10 : vector<128x128xf32> to vector<128x128xbf16>
    %c0_9 = arith.constant 0 : index
    %c0_10 = arith.constant 0 : index
    %12 = vector.load %arg5[%c0_9, %c0_10] : memref<128x128xbf16, #tpu.memory_space<vmem>>, vector<128x128xbf16>
    %cst_11 = arith.constant dense<0.000000e+00> : vector<128x128xf32>
    %13 = tpu.matmul %11, %12, %cst_11 {dimension_numbers = #tpu.dot_dimension_numbers<[1], [0], [0], [1], [0, 0, 1, 1], [], []>} : vector<128x128xbf16>, vector<128x128xbf16>, vector<128x128xf32> -> vector<128x128xf32>
    %c0_12 = arith.constant 0 : index
    %c0_13 = arith.constant 0 : index
    %14 = vector.load %arg6[%c0_12, %c0_13] : memref<1x128xf32, #tpu.memory_space<vmem>>, vector<1x128xf32>
    %15 = vector.broadcast %14 : vector<1x128xf32> to vector<128x128xf32>
    %16 = arith.addf %13, %15 : vector<128x128xf32>
    %cst_14 = arith.constant 0.000000e+00 : f32
    %17 = vector.broadcast %cst_14 : f32 to vector<128x128xf32>
    %18 = arith.maximumf %16, %17 : vector<128x128xf32>
    %19 = arith.truncf %18 : vector<128x128xf32> to vector<128x128xbf16>
    %c0_15 = arith.constant 0 : index
    %c0_16 = arith.constant 0 : index
    %20 = vector.load %arg7[%c0_15, %c0_16] : memref<128x128xbf16, #tpu.memory_space<vmem>>, vector<128x128xbf16>
    %cst_17 = arith.constant dense<0.000000e+00> : vector<128x128xf32>
    %21 = tpu.matmul %19, %20, %cst_17 {dimension_numbers = #tpu.dot_dimension_numbers<[1], [0], [0], [1], [0, 0, 1, 1], [], []>} : vector<128x128xbf16>, vector<128x128xbf16>, vector<128x128xf32> -> vector<128x128xf32>
    %c0_18 = arith.constant 0 : index
    %c0_19 = arith.constant 0 : index
    %22 = vector.load %arg8[%c0_18, %c0_19] : memref<1x128xf32, #tpu.memory_space<vmem>>, vector<1x128xf32>
    %23 = vector.broadcast %22 : vector<1x128xf32> to vector<128x128xf32>
    %24 = arith.addf %21, %23 : vector<128x128xf32>
    %cst_20 = arith.constant dense<0xFF800000> : vector<128xf32>
    %25 = vector.multi_reduction <maximumf>, %24, %cst_20 [1] : vector<128x128xf32> to vector<128xf32>
    %26 = vector.shape_cast %25 : vector<128xf32> to vector<128x1xf32>
    %27 = vector.broadcast %26 : vector<128x1xf32> to vector<128x128xf32>
    %28 = arith.subf %24, %27 : vector<128x128xf32>
    %29 = math.exp %28 : vector<128x128xf32>
    %cst_21 = arith.constant dense<0.000000e+00> : vector<128xf32>
    %30 = vector.multi_reduction <add>, %29, %cst_21 [1] : vector<128x128xf32> to vector<128xf32>
    %31 = vector.shape_cast %30 : vector<128xf32> to vector<128x1xf32>
    %32 = math.log %31 : vector<128x1xf32>
    %33 = arith.addf %32, %26 : vector<128x1xf32>
    %34 = vector.broadcast %33 : vector<128x1xf32> to vector<128x128xf32>
    %35 = arith.subf %24, %34 : vector<128x128xf32>
    %c0_22 = arith.constant 0 : index
    %c0_23 = arith.constant 0 : index
    %36 = vector.load %arg9[%c0_22, %c0_23] : memref<128x128xf32, #tpu.memory_space<vmem>>, vector<128x128xf32>
    tpu.vector_store %arg9[%c0_22, %c0_23], %35 {strides = array<i32>} : memref<128x128xf32, #tpu.memory_space<vmem>>, vector<128x128xf32>,
    return
  }
  func.func @transform_0(%arg0: i32) -> (i32, i32) {
    %c0_i32 = arith.constant 0 : i32
    %c0_i32_0 = arith.constant 0 : i32
    return %arg0, %c0_i32 : i32, i32
  }
  func.func @transform_1(%arg0: i32) -> (i32, i32) {
    %c0_i32 = arith.constant 0 : i32
    %c0_i32_0 = arith.constant 0 : i32
    %c0_i32_1 = arith.constant 0 : i32
    return %c0_i32, %c0_i32_0 : i32, i32
  }
  func.func @transform_2(%arg0: i32) -> (i32, i32) {
    %c0_i32 = arith.constant 0 : i32
    %c0_i32_0 = arith.constant 0 : i32
    %c0_i32_1 = arith.constant 0 : i32
    return %c0_i32, %c0_i32_0 : i32, i32
  }
  func.func @transform_3(%arg0: i32) -> (i32, i32) {
    %c0_i32 = arith.constant 0 : i32
    %c0_i32_0 = arith.constant 0 : i32
    %c0_i32_1 = arith.constant 0 : i32
    return %c0_i32, %c0_i32_0 : i32, i32
  }
  func.func @transform_4(%arg0: i32) -> (i32, i32) {
    %c0_i32 = arith.constant 0 : i32
    %c0_i32_0 = arith.constant 0 : i32
    %c0_i32_1 = arith.constant 0 : i32
    return %c0_i32, %c0_i32_0 : i32, i32
  }
  func.func @transform_5(%arg0: i32) -> (i32, i32) {
    %c0_i32 = arith.constant 0 : i32
    %c0_i32_0 = arith.constant 0 : i32
    %c0_i32_1 = arith.constant 0 : i32
    return %c0_i32, %c0_i32_0 : i32, i32
  }
  func.func @transform_6(%arg0: i32) -> (i32, i32) {
    %c0_i32 = arith.constant 0 : i32
    %c0_i32_0 = arith.constant 0 : i32
    %c0_i32_1 = arith.constant 0 : i32
    return %c0_i32, %c0_i32_0 : i32, i32
  }
  func.func @transform_7(%arg0: i32) -> (i32, i32) {
    %c0_i32 = arith.constant 0 : i32
    %c0_i32_0 = arith.constant 0 : i32
    %c0_i32_1 = arith.constant 0 : i32
    return %c0_i32, %c0_i32_0 : i32, i32
  }
  func.func @transform_8(%arg0: i32) -> (i32, i32) {
    %c0_i32 = arith.constant 0 : i32
    %c0_i32_0 = arith.constant 0 : i32
    return %arg0, %c0_i32 : i32, i32
  }
}

</mosaic_0001>

<llo_original>
// kernel: feedforward_forward.1
$region0: #{feedforward_forward.1}
  #allocation0 [shape = 'u32[]', space=smem, size = 0x4, offset = 0x4, fixed_abs, tag = 'smem constant byte address 0x4 - core index']
  #allocation1 [shape = 'u32[144,128]{1,0:T(1,128)}', space=vmem, size = 0x12000, scoped, tag = 'internal scratch']
  %s0 = inlined_call_operand.vmem [shape: bf16[256,128], index: 0, kind: input, shape index: {}]
  %s1 = inlined_call_operand.vmem [shape: bf16[128,128], index: 1, kind: input, shape index: {}]
  %s2 = inlined_call_operand.vmem [shape: bf16[128,128], index: 2, kind: input, shape index: {}]
  %s3 = inlined_call_operand.vmem [shape: f32[1,128], index: 3, kind: input, shape index: {}]
  %s4 = inlined_call_operand.vmem [shape: bf16[128,128], index: 4, kind: input, shape index: {}]
  %s5 = inlined_call_operand.vmem [shape: f32[1,128], index: 5, kind: input, shape index: {}]
  %s6 = inlined_call_operand.vmem [shape: bf16[128,128], index: 6, kind: input, shape index: {}]
  %s7 = inlined_call_operand.vmem [shape: f32[1,128], index: 7, kind: input, shape index: {}]
  %s8 = inlined_call_operand.vmem [shape: f32[256,128], index: 8, kind: output, shape index: {}]
  %s9 = sld [smem:[#allocation0]]
  $region65: #{feedforward_forward.1} parent=0
    _
  %s11 = ssub.s32 1, %s9
  %s12 = scalar_select 0, %s11, %s9
  loop: start=0, step=1, limit=4
  $region2: #{feedforward_forward.1} parent=0 // loop_pre_header
    _
  $region3: #{feedforward_forward.1} parent=0 // loop_header
    %s14 = sphi 0, %s18
    %p15 = scmp.ge.s32.totalorder %s14, 4
    %s24 = sphi 0, %s26
    %s27 = sphi 0, %s24
    %s28 = sphi 0, %s27
    %s44 = sphi 0, %s28
    %s48 = sphi 0, %s48
    %s50 = sphi 0, %s48
    %s51 = sphi 0, %s50
    %s65 = sphi 0, %s51
    %s69 = sphi 0, %s69
    %s71 = sphi 0, %s69
    %s72 = sphi 0, %s71
    %s86 = sphi 0, %s72
    %s90 = sphi 0, %s90
    %s92 = sphi 0, %s90
    %s93 = sphi 0, %s92
    %s107 = sphi 0, %s93
    %s111 = sphi 0, %s111
    %s113 = sphi 0, %s111
    %s114 = sphi 0, %s113
    %s128 = sphi 0, %s114
    %s132 = sphi 0, %s132
    %s134 = sphi 0, %s132
    %s135 = sphi 0, %s134
    %s149 = sphi 0, %s135
    %s153 = sphi 0, %s153
    %s155 = sphi 0, %s153
    %s156 = sphi 0, %s155
    %s170 = sphi 0, %s156
    %s174 = sphi 0, %s174
    %s176 = sphi 0, %s174
    %s177 = sphi 0, %s176
    %s191 = sphi 0, %s177
    %s197 = sphi 0, %s199
    %s200 = sphi 0, %s197
    %s201 = sphi 0, %s200
    %s217 = sphi 0, %s201
  $region4: #{feedforward_forward.1} parent=0 // loop_header_branch
    %17 = sbr.rel (%p15) target = $region8
  $region5: #{feedforward_forward.1} parent=0 // loop_body
    %s19 = ssub.s32 %s14, 1
    %s20 = ssub.s32 %s14, 2
    %s21 = sadd.s32 %s14, 1
    %s22 = ssub.s32 %s14, %s21
    %p23 = scmp.eq.s32.totalorder %s22, 0
    %s25 = sadd.s32 %s24, 1
    %s26 = scalar_select %p23, %s24, %s25
    %p29 = pneg %p23
    %p30 = scmp.eq.s32.totalorder %s14, 1
    %p31 = por %p29, %p30
    %p32 = scmp.ne.s32.totalorder %s24, %s27
    %p33 = scmp.eq.s32.totalorder %s14, 0
    %p34 = por %p32, %p33
    %p35 = scmp.ne.s32.totalorder %s24, %s27
    %p36 = scmp.eq.s32.totalorder %s19, 1
    %p37 = por %p35, %p36
    %p38 = scmp.ne.s32.totalorder %s27, %s28
    %p39 = scmp.eq.s32.totalorder %s19, 0
    %p40 = por %p38, %p39
    %p41 = scmp.ne.s32.totalorder %s27, %s28
    %p42 = scmp.eq.s32.totalorder %s20, 1
    %p43 = por %p41, %p42
    %p45 = scmp.ne.s32.totalorder %s28, %s44
    %p46 = scmp.eq.s32.totalorder %s20, 0
    %p47 = por %p45, %p46
    %s49 = sadd.s32 %s48, 1
    %p52 = scmp.eq.s32.totalorder %s14, 1
    %p53 = scmp.ne.s32.totalorder %s48, %s50
    %p54 = scmp.eq.s32.totalorder %s14, 0
    %p55 = por %p53, %p54
    %p56 = scmp.ne.s32.totalorder %s48, %s50
    %p57 = scmp.eq.s32.totalorder %s19, 1
    %p58 = por %p56, %p57
    %p59 = scmp.ne.s32.totalorder %s50, %s51
    %p60 = scmp.eq.s32.totalorder %s19, 0
    %p61 = por %p59, %p60
    %p62 = scmp.ne.s32.totalorder %s50, %s51
    %p63 = scmp.eq.s32.totalorder %s20, 1
    %p64 = por %p62, %p63
    %p66 = scmp.ne.s32.totalorder %s51, %s65
    %p67 = scmp.eq.s32.totalorder %s20, 0
    %p68 = por %p66, %p67
    %s70 = sadd.s32 %s69, 1
    %p73 = scmp.eq.s32.totalorder %s14, 1
    %p74 = scmp.ne.s32.totalorder %s69, %s71
    %p75 = scmp.eq.s32.totalorder %s14, 0
    %p76 = por %p74, %p75
    %p77 = scmp.ne.s32.totalorder %s69, %s71
    %p78 = scmp.eq.s32.totalorder %s19, 1
    %p79 = por %p77, %p78
    %p80 = scmp.ne.s32.totalorder %s71, %s72
    %p81 = scmp.eq.s32.totalorder %s19, 0
    %p82 = por %p80, %p81
    %p83 = scmp.ne.s32.totalorder %s71, %s72
    %p84 = scmp.eq.s32.totalorder %s20, 1
    %p85 = por %p83, %p84
    %p87 = scmp.ne.s32.totalorder %s72, %s86
    %p88 = scmp.eq.s32.totalorder %s20, 0
    %p89 = por %p87, %p88
    %s91 = sadd.s32 %s90, 1
    %p94 = scmp.eq.s32.totalorder %s14, 1
    %p95 = scmp.ne.s32.totalorder %s90, %s92
    %p96 = scmp.eq.s32.totalorder %s14, 0
    %p97 = por %p95, %p96
    %p98 = scmp.ne.s32.totalorder %s90, %s92
    %p99 = scmp.eq.s32.totalorder %s19, 1
    %p100 = por %p98, %p99
    %p101 = scmp.ne.s32.totalorder %s92, %s93
    %p102 = scmp.eq.s32.totalorder %s19, 0
    %p103 = por %p101, %p102
    %p104 = scmp.ne.s32.totalorder %s92, %s93
    %p105 = scmp.eq.s32.totalorder %s20, 1
    %p106 = por %p104, %p105
    %p108 = scmp.ne.s32.totalorder %s93, %s107
    %p109 = scmp.eq.s32.totalorder %s20, 0
    %p110 = por %p108, %p109
    %s112 = sadd.s32 %s111, 1
    %p115 = scmp.eq.s32.totalorder %s14, 1
    %p116 = scmp.ne.s32.totalorder %s111, %s113
    %p117 = scmp.eq.s32.totalorder %s14, 0
    %p118 = por %p116, %p117
    %p119 = scmp.ne.s32.totalorder %s111, %s113
    %p120 = scmp.eq.s32.totalorder %s19, 1
    %p121 = por %p119, %p120
    %p122 = scmp.ne.s32.totalorder %s113, %s114
    %p123 = scmp.eq.s32.totalorder %s19, 0
    %p124 = por %p122, %p123
    %p125 = scmp.ne.s32.totalorder %s113, %s114
    %p126 = scmp.eq.s32.totalorder %s20, 1
    %p127 = por %p125, %p126
    %p129 = scmp.ne.s32.totalorder %s114, %s128
    %p130 = scmp.eq.s32.totalorder %s20, 0
    %p131 = por %p129, %p130
    %s133 = sadd.s32 %s132, 1
    %p136 = scmp.eq.s32.totalorder %s14, 1
    %p137 = scmp.ne.s32.totalorder %s132, %s134
    %p138 = scmp.eq.s32.totalorder %s14, 0
    %p139 = por %p137, %p138
    %p140 = scmp.ne.s32.totalorder %s132, %s134
    %p141 = scmp.eq.s32.totalorder %s19, 1
    %p142 = por %p140, %p141
    %p143 = scmp.ne.s32.totalorder %s134, %s135
    %p144 = scmp.eq.s32.totalorder %s19, 0
    %p145 = por %p143, %p144
    %p146 = scmp.ne.s32.totalorder %s134, %s135
    %p147 = scmp.eq.s32.totalorder %s20, 1
    %p148 = por %p146, %p147
    %p150 = scmp.ne.s32.totalorder %s135, %s149
    %p151 = scmp.eq.s32.totalorder %s20, 0
    %p152 = por %p150, %p151
    %s154 = sadd.s32 %s153, 1
    %p157 = scmp.eq.s32.totalorder %s14, 1
    %p158 = scmp.ne.s32.totalorder %s153, %s155
    %p159 = scmp.eq.s32.totalorder %s14, 0
    %p160 = por %p158, %p159
    %p161 = scmp.ne.s32.totalorder %s153, %s155
    %p162 = scmp.eq.s32.totalorder %s19, 1
    %p163 = por %p161, %p162
    %p164 = scmp.ne.s32.totalorder %s155, %s156
    %p165 = scmp.eq.s32.totalorder %s19, 0
    %p166 = por %p164, %p165
    %p167 = scmp.ne.s32.totalorder %s155, %s156
    %p168 = scmp.eq.s32.totalorder %s20, 1
    %p169 = por %p167, %p168
    %p171 = scmp.ne.s32.totalorder %s156, %s170
    %p172 = scmp.eq.s32.totalorder %s20, 0
    %p173 = por %p171, %p172
    %s175 = sadd.s32 %s174, 1
    %p178 = scmp.eq.s32.totalorder %s14, 1
    %p179 = scmp.ne.s32.totalorder %s174, %s176
    %p180 = scmp.eq.s32.totalorder %s14, 0
    %p181 = por %p179, %p180
    %p182 = scmp.ne.s32.totalorder %s174, %s176
    %p183 = scmp.eq.s32.totalorder %s19, 1
    %p184 = por %p182, %p183
    %p185 = scmp.ne.s32.totalorder %s176, %s177
    %p186 = scmp.eq.s32.totalorder %s19, 0
    %p187 = por %p185, %p186
    %p188 = scmp.ne.s32.totalorder %s176, %s177
    %p189 = scmp.eq.s32.totalorder %s20, 1
    %p190 = por %p188, %p189
    %p192 = scmp.ne.s32.totalorder %s177, %s191
    %p193 = scmp.eq.s32.totalorder %s20, 0
    %p194 = por %p192, %p193
    %s195 = ssub.s32 %s14, %s21
    %p196 = scmp.eq.s32.totalorder %s195, 0
    %s198 = sadd.s32 %s197, 1
    %s199 = scalar_select %p196, %s197, %s198
    %p202 = pneg %p196
    %p203 = scmp.eq.s32.totalorder %s14, 1
    %p204 = por %p202, %p203
    %p205 = scmp.ne.s32.totalorder %s197, %s200
    %p206 = scmp.eq.s32.totalorder %s14, 0
    %p207 = por %p205, %p206
    %p208 = scmp.ne.s32.totalorder %s197, %s200
    %p209 = scmp.eq.s32.totalorder %s19, 1
    %p210 = por %p208, %p209
    %p211 = scmp.ne.s32.totalorder %s200, %s201
    %p212 = scmp.eq.s32.totalorder %s19, 0
    %p213 = por %p211, %p212
    %p214 = scmp.ne.s32.totalorder %s200, %s201
    %p215 = scmp.eq.s32.totalorder %s20, 1
    %p216 = por %p214, %p215
    %p218 = scmp.ne.s32.totalorder %s201, %s217
    %p219 = scmp.eq.s32.totalorder %s20, 0
    %p220 = por %p218, %p219
    %p221 = scmp.le.s32.totalorder 1, %s14
    %p222 = scmp.lt.s32.totalorder %s14, 3
    %p223 = pnand %p221, %p222
    %p224 = pneg %p223
    // Predicated region
    $region9: #{feedforward_forward.1} parent=5 // pred_check
      _
    $region10: #{feedforward_forward.1} parent=5 // pred_check_branch
      %226 = sbr.rel (%p223) target = $region12
    $region11: #{feedforward_forward.1} parent=5 // pred_region
      %s227 = ssub.s32 %s14, 1
      // Predicated region
      $region13: #{feedforward_forward.1} parent=11 // pred_check
        %p228 = pneg %p61
      $region14: #{feedforward_forward.1} parent=11 // pred_check_branch
        %230 = sbr.rel (%p228) target = $region16
      $region15: #{feedforward_forward.1} parent=11 // pred_region
        _
      $region16: #{feedforward_forward.1} parent=11 // pred_fallthru
        _
      // Predicated region
      $region17: #{feedforward_forward.1} parent=11 // pred_check
        %p231 = pneg %p82
      $region18: #{feedforward_forward.1} parent=11 // pred_check_branch
        %233 = sbr.rel (%p231) target = $region20
      $region19: #{feedforward_forward.1} parent=11 // pred_region
        _
      $region20: #{feedforward_forward.1} parent=11 // pred_fallthru
        _
      // Predicated region
      $region21: #{feedforward_forward.1} parent=11 // pred_check
        %p234 = pneg %p103
      $region22: #{feedforward_forward.1} parent=11 // pred_check_branch
        %236 = sbr.rel (%p234) target = $region24
      $region23: #{feedforward_forward.1} parent=11 // pred_region
        _
      $region24: #{feedforward_forward.1} parent=11 // pred_fallthru
        _
      // Predicated region
      $region25: #{feedforward_forward.1} parent=11 // pred_check
        %p237 = pneg %p124
      $region26: #{feedforward_forward.1} parent=11 // pred_check_branch
        %239 = sbr.rel (%p237) target = $region28
      $region27: #{feedforward_forward.1} parent=11 // pred_region
        _
      $region28: #{feedforward_forward.1} parent=11 // pred_fallthru
        _
      // Predicated region
      $region29: #{feedforward_forward.1} parent=11 // pred_check
        %p240 = pneg %p145
      $region30: #{feedforward_forward.1} parent=11 // pred_check_branch
        %242 = sbr.rel (%p240) target = $region32
      $region31: #{feedforward_forward.1} parent=11 // pred_region
        _
      $region32: #{feedforward_forward.1} parent=11 // pred_fallthru
        _
      // Predicated region
      $region33: #{feedforward_forward.1} parent=11 // pred_check
        %p243 = pneg %p166
      $region34: #{feedforward_forward.1} parent=11 // pred_check_branch
        %245 = sbr.rel (%p243) target = $region36
      $region35: #{feedforward_forward.1} parent=11 // pred_region
        _
      $region36: #{feedforward_forward.1} parent=11 // pred_fallthru
        _
      // Predicated region
      $region37: #{feedforward_forward.1} parent=11 // pred_check
        %p246 = pneg %p187
      $region38: #{feedforward_forward.1} parent=11 // pred_check_branch
        %248 = sbr.rel (%p246) target = $region40
      $region39: #{feedforward_forward.1} parent=11 // pred_region
        _
      $region40: #{feedforward_forward.1} parent=11 // pred_fallthru
        _
    $region12: #{feedforward_forward.1} parent=5 // pred_fallthru
      _
    %p249 = scmp.lt.s32.totalorder %s14, 2
    // Predicated region
    $region41: #{feedforward_forward.1} parent=5 // pred_check
      %p250 = pneg %p249
    $region42: #{feedforward_forward.1} parent=5 // pred_check_branch
      %252 = sbr.rel (%p250) target = $region44
    $region43: #{feedforward_forward.1} parent=5 // pred_region
      // Predicated region
      $region45: #{feedforward_forward.1} parent=43 // pred_check
        %p253 = pneg %p34
      $region46: #{feedforward_forward.1} parent=43 // pred_check_branch
        %255 = sbr.rel (%p253) target = $region48
      $region47: #{feedforward_forward.1} parent=43 // pred_region
        %s256 = smul.u32 16, %s14
        %p257 = scmp.lt.s32.totalorder %s256, 31
        %s258 = scalar_select %p257, %s256, 31
        %s259 = smul.addr %s258, 4
        %s260 = scalar_lea.vmem %s0, %s259
        %s261 = smul.u32 16, %s14
      $region48: #{feedforward_forward.1} parent=43 // pred_fallthru
        _
    $region44: #{feedforward_forward.1} parent=5 // pred_fallthru
      _
    %p262 = scmp.le.s32.totalorder 1, %s14
    %p263 = scmp.lt.s32.totalorder %s14, 3
    %p264 = pnand %p262, %p263
    %p265 = pneg %p264
    // Predicated region
    $region49: #{feedforward_forward.1} parent=5 // pred_check
      _
    $region50: #{feedforward_forward.1} parent=5 // pred_check_branch
      %267 = sbr.rel (%p264) target = $region52
    $region51: #{feedforward_forward.1} parent=5 // pred_region
      %s268 = ssub.s32 %s14, 1
      %s269 = smul.u32 16, %s19
      %p270 = scmp.lt.s32.totalorder %s269, 31
      %s271 = scalar_select %p270, %s269, 31
      %s272 = smul.addr %s271, 4
      %s273 = scalar_lea.vmem %s0, %s272
      %p274 = pneg %p40
      %p275 = pneg %p37
      %p276 = pneg %p61
      %p277 = pneg %p58
      %p278 = pneg %p82
      %p279 = pneg %p79
      %p280 = pneg %p103
      %p281 = pneg %p100
      %p282 = pneg %p124
      %p283 = pneg %p121
      %p284 = pneg %p145
      %p285 = pneg %p142
      %p286 = pneg %p166
      %p287 = pneg %p163
      %p288 = pneg %p187
      %p289 = pneg %p184
      %p290 = pneg %p213
      %p291 = pneg %p210
      %s292 = smul.u32 16, %s19
      %p293 = scmp.lt.s32.totalorder %s292, 31
      %s294 = scalar_select %p293, %s292, 31
      %s295 = smul.addr %s294, 8
      %s296 = scalar_lea.vmem %s8, %s295
      %s297 = smul.u32 16, %s19
      %p298 = scmp.lt.s32.totalorder %s297, 31
      %s299 = scalar_select %p298, %s297, 31
      %s300 = smul.addr %s299, 4
      %s301 = scalar_lea.vmem %s0, %s300
      %s302 = smul.u32 16, %s19
      %s303 = smul.u32 16, %s19
      %p304 = scmp.lt.s32.totalorder %s303, 31
      %s305 = scalar_select %p304, %s303, 31
      %s306 = smul.addr %s305, 8
      %s307 = scalar_lea.vmem %s8, %s306
      %s308 = smul.u32 16, %s19
      %v310 = vld [vmem:[%s301] sm:$0xf]
      %v311 = vld [vmem:[%s301 + $0x4] sm:$0xf]
      %v312 = vld [vmem:[%s301 + $0x8] sm:$0xf]
      %v313 = vld [vmem:[%s301 + $0xc] sm:$0xf]
      %v314 = vld [vmem:[%s301 + $0x10] sm:$0xf]
      %v315 = vld [vmem:[%s301 + $0x14] sm:$0xf]
      %v316 = vld [vmem:[%s301 + $0x18] sm:$0xf]
      %v317 = vld [vmem:[%s301 + $0x1c] sm:$0xf]
      %v318 = vld [vmem:[%s301 + $0x20] sm:$0xf]
      %v319 = vld [vmem:[%s301 + $0x24] sm:$0xf]
      %v320 = vld [vmem:[%s301 + $0x28] sm:$0xf]
      %v321 = vld [vmem:[%s301 + $0x2c] sm:$0xf]
      %v322 = vld [vmem:[%s301 + $0x30] sm:$0xf]
      %v323 = vld [vmem:[%s301 + $0x34] sm:$0xf]
      %v324 = vld [vmem:[%s301 + $0x38] sm:$0xf]
      %v325 = vld [vmem:[%s301 + $0x3c] sm:$0xf]
      %v326 = vld [vmem:[%s1] sm:$0xf]
      %v327 = vld [vmem:[%s1 + $0x4] sm:$0xf]
      %v328 = vld [vmem:[%s1 + $0x8] sm:$0xf]
      %v329 = vld [vmem:[%s1 + $0xc] sm:$0xf]
      %v330 = vld [vmem:[%s1 + $0x10] sm:$0xf]
      %v331 = vld [vmem:[%s1 + $0x14] sm:$0xf]
      %v332 = vld [vmem:[%s1 + $0x18] sm:$0xf]
      %v333 = vld [vmem:[%s1 + $0x1c] sm:$0xf]
      %v334 = vld [vmem:[%s1 + $0x20] sm:$0xf]
      %v335 = vld [vmem:[%s1 + $0x24] sm:$0xf]
      %v336 = vld [vmem:[%s1 + $0x28] sm:$0xf]
      %v337 = vld [vmem:[%s1 + $0x2c] sm:$0xf]
      %v338 = vld [vmem:[%s1 + $0x30] sm:$0xf]
      %v339 = vld [vmem:[%s1 + $0x34] sm:$0xf]
      %v340 = vld [vmem:[%s1 + $0x38] sm:$0xf]
      %v341 = vld [vmem:[%s1 + $0x3c] sm:$0xf]
      %v358 = vunpack.c.l.b16 %v310
      %v359 = vunpack.c.l.b16 %v311
      %v360 = vunpack.c.l.b16 %v312
      %v361 = vunpack.c.l.b16 %v313
      %v362 = vunpack.c.l.b16 %v314
      %v363 = vunpack.c.l.b16 %v315
      %v364 = vunpack.c.l.b16 %v316
      %v365 = vunpack.c.l.b16 %v317
      %v366 = vunpack.c.l.b16 %v318
      %v367 = vunpack.c.l.b16 %v319
      %v368 = vunpack.c.l.b16 %v320
      %v369 = vunpack.c.l.b16 %v321
      %v370 = vunpack.c.l.b16 %v322
      %v371 = vunpack.c.l.b16 %v323
      %v372 = vunpack.c.l.b16 %v324
      %v373 = vunpack.c.l.b16 %v325
      %v374 = vpack.c.b16 %v359, %v358
      %v375 = vpack.c.b16 %v361, %v360
      %v376 = vpack.c.b16 %v363, %v362
      %v377 = vpack.c.b16 %v365, %v364
      %v378 = vpack.c.b16 %v367, %v366
      %v379 = vpack.c.b16 %v369, %v368
      %v380 = vpack.c.b16 %v371, %v370
      %v381 = vpack.c.b16 %v373, %v372
      %v406 = vunpack.c.l.b16 %v326
      %v407 = vunpack.c.l.b16 %v327
      %v408 = vunpack.c.l.b16 %v328
      %v409 = vunpack.c.l.b16 %v329
      %v410 = vunpack.c.l.b16 %v330
      %v411 = vunpack.c.l.b16 %v331
      %v412 = vunpack.c.l.b16 %v332
      %v413 = vunpack.c.l.b16 %v333
      %v414 = vunpack.c.l.b16 %v334
      %v415 = vunpack.c.l.b16 %v335
      %v416 = vunpack.c.l.b16 %v336
      %v417 = vunpack.c.l.b16 %v337
      %v418 = vunpack.c.l.b16 %v338
      %v419 = vunpack.c.l.b16 %v339
      %v420 = vunpack.c.l.b16 %v340
      %v421 = vunpack.c.l.b16 %v341
      %v422 = vpack.c.b16 %v407, %v406
      %v423 = vpack.c.b16 %v409, %v408
      %v424 = vpack.c.b16 %v411, %v410
      %v425 = vpack.c.b16 %v413, %v412
      %v426 = vpack.c.b16 %v415, %v414
      %v427 = vpack.c.b16 %v417, %v416
      %v428 = vpack.c.b16 %v419, %v418
      %v429 = vpack.c.b16 %v421, %v420
      %438 = vmatprep.subr.bf16.mxu0 0
      %439 = vmatpush1.bf16.msra.mxu0 %v422
      %440 = vmatprep.subr.bf16.mxu0 0
      %441 = vmatpush1.bf16.msra.mxu0 %v423
      %442 = vmatprep.subr.bf16.mxu0 0
      %443 = vmatpush1.bf16.msra.mxu0 %v424
      %444 = vmatprep.subr.bf16.mxu0 0
      %445 = vmatpush1.bf16.msra.mxu0 %v425
      %446 = vmatprep.subr.bf16.mxu0 0
      %447 = vmatpush1.bf16.msra.mxu0 %v426
      %448 = vmatprep.subr.bf16.mxu0 0
      %449 = vmatpush1.bf16.msra.mxu0 %v427
      %450 = vmatprep.subr.bf16.mxu0 0
      %451 = vmatpush1.bf16.msra.mxu0 %v428
      %452 = vmatprep.subr.bf16.mxu0 0
      %453 = vmatpush1.bf16.msra.mxu0 %v429
      %454 = vmatprep.subr.bf16.mxu0 0
      %455 = vmatpush1.bf16.msra.mxu0 0
      %456 = vmatprep.subr.bf16.mxu0 0
      %457 = vmatpush1.bf16.msra.mxu0 0
      %458 = vmatprep.subr.bf16.mxu0 0
      %459 = vmatpush1.bf16.msra.mxu0 0
      %460 = vmatprep.subr.bf16.mxu0 0
      %461 = vmatpush1.bf16.msra.mxu0 0
      %462 = vmatprep.subr.bf16.mxu0 0
      %463 = vmatpush1.bf16.msra.mxu0 0
      %464 = vmatprep.subr.bf16.mxu0 0
      %465 = vmatpush1.bf16.msra.mxu0 0
      %466 = vmatprep.subr.bf16.mxu0 0
      %467 = vmatpush1.bf16.msra.mxu0 0
      %468 = vmatprep.subr.bf16.mxu0 0
      %469 = vmatpush1.bf16.msra.mxu0 0
      %470 = vmatprep.mubr.bf16.mxu0 0
      %471 = vmatmul.mubr.bf16.gmra.mrb[0].mxu0 %v374
      %v472 = vpop.f32.mrb[0].mxu0
      %v473 = vadd.f32 0.0, %v472
      %v474 = vpop.f32.mrb[0].mxu0
      %v475 = vpop.f32.mrb[0].mxu0
      %v476 = vadd.f32 0.0, %v475
      %v477 = vpop.f32.mrb[0].mxu0
      %478 = vmatprep.mubr.bf16.mxu0 0
      %479 = vmatmul.mubr.bf16.gmra.mrb[0].mxu0 %v375
      %v480 = vpop.f32.mrb[0].mxu0
      %v481 = vadd.f32 0.0, %v480
      %v482 = vpop.f32.mrb[0].mxu0
      %v483 = vpop.f32.mrb[0].mxu0
      %v484 = vadd.f32 0.0, %v483
      %v485 = vpop.f32.mrb[0].mxu0
      %486 = vmatprep.mubr.bf16.mxu0 0
      %487 = vmatmul.mubr.bf16.gmra.mrb[0].mxu0 %v376
      %v488 = vpop.f32.mrb[0].mxu0
      %v489 = vadd.f32 0.0, %v488
      %v490 = vpop.f32.mrb[0].mxu0
      %v491 = vpop.f32.mrb[0].mxu0
      %v492 = vadd.f32 0.0, %v491
      %v493 = vpop.f32.mrb[0].mxu0
      %494 = vmatprep.mubr.bf16.mxu0 0
      %495 = vmatmul.mubr.bf16.gmra.mrb[0].mxu0 %v377
      %v496 = vpop.f32.mrb[0].mxu0
      %v497 = vadd.f32 0.0, %v496
      %v498 = vpop.f32.mrb[0].mxu0
      %v499 = vpop.f32.mrb[0].mxu0
      %v500 = vadd.f32 0.0, %v499
      %v501 = vpop.f32.mrb[0].mxu0
      %502 = vmatprep.mubr.bf16.mxu0 0
      %503 = vmatmul.mubr.bf16.gmra.mrb[0].mxu0 %v378
      %v504 = vpop.f32.mrb[0].mxu0
      %v505 = vadd.f32 0.0, %v504
      %v506 = vpop.f32.mrb[0].mxu0
      %v507 = vpop.f32.mrb[0].mxu0
      %v508 = vadd.f32 0.0, %v507
      %v509 = vpop.f32.mrb[0].mxu0
      %510 = vmatprep.mubr.bf16.mxu0 0
      %511 = vmatmul.mubr.bf16.gmra.mrb[0].mxu0 %v379
      %v512 = vpop.f32.mrb[0].mxu0
      %v513 = vadd.f32 0.0, %v512
      %v514 = vpop.f32.mrb[0].mxu0
      %v515 = vpop.f32.mrb[0].mxu0
      %v516 = vadd.f32 0.0, %v515
      %v517 = vpop.f32.mrb[0].mxu0
      %518 = vmatprep.mubr.bf16.mxu0 0
      %519 = vmatmul.mubr.bf16.gmra.mrb[0].mxu0 %v380
      %v520 = vpop.f32.mrb[0].mxu0
      %v521 = vadd.f32 0.0, %v520
      %v522 = vpop.f32.mrb[0].mxu0
      %v523 = vpop.f32.mrb[0].mxu0
      %v524 = vadd.f32 0.0, %v523
      %v525 = vpop.f32.mrb[0].mxu0
      %526 = vmatprep.mubr.bf16.mxu0 0
      %527 = vmatmul.mubr.bf16.gmra.mrb[0].mxu0 %v381
      %v528 = vpop.f32.mrb[0].mxu0
      %v529 = vadd.f32 0.0, %v528
      %v530 = vpop.f32.mrb[0].mxu0
      %v531 = vpop.f32.mrb[0].mxu0
      %v532 = vadd.f32 0.0, %v531
      %v533 = vpop.f32.mrb[0].mxu0
      %534 = vdwg.mxu0
      %v535 = vpack.c.bf16 %v476, %v473
      %v536 = vpack.c.bf16 %v484, %v481
      %v537 = vpack.c.bf16 %v492, %v489
      %v538 = vpack.c.bf16 %v500, %v497
      %v539 = vpack.c.bf16 %v508, %v505
      %v540 = vpack.c.bf16 %v516, %v513
      %v541 = vpack.c.bf16 %v524, %v521
      %v542 = vpack.c.bf16 %v532, %v529
      %v543 = vld [vmem:[%s2] sm:$0xf]
      %v544 = vld [vmem:[%s2 + $0x4] sm:$0xf]
      %v545 = vld [vmem:[%s2 + $0x8] sm:$0xf]
      %v546 = vld [vmem:[%s2 + $0xc] sm:$0xf]
      %v547 = vld [vmem:[%s2 + $0x10] sm:$0xf]
      %v548 = vld [vmem:[%s2 + $0x14] sm:$0xf]
      %v549 = vld [vmem:[%s2 + $0x18] sm:$0xf]
      %v550 = vld [vmem:[%s2 + $0x1c] sm:$0xf]
      %v551 = vld [vmem:[%s2 + $0x20] sm:$0xf]
      %v552 = vld [vmem:[%s2 + $0x24] sm:$0xf]
      %v553 = vld [vmem:[%s2 + $0x28] sm:$0xf]
      %v554 = vld [vmem:[%s2 + $0x2c] sm:$0xf]
      %v555 = vld [vmem:[%s2 + $0x30] sm:$0xf]
      %v556 = vld [vmem:[%s2 + $0x34] sm:$0xf]
      %v557 = vld [vmem:[%s2 + $0x38] sm:$0xf]
      %v558 = vld [vmem:[%s2 + $0x3c] sm:$0xf]
      %v559 = vld [vmem:[%s3] sm:$0x1]
      %v561 = vlaneseq
      %v562 = vshrl.u32 %v561, 7
      %v563 = vsub.s32 0, %v562
      %v564 = vrot.slane %v559, %v563
      %v582 = vunpack.c.l.b16 %v543
      %v583 = vunpack.c.l.b16 %v544
      %v584 = vunpack.c.l.b16 %v545
      %v585 = vunpack.c.l.b16 %v546
      %v586 = vunpack.c.l.b16 %v547
      %v587 = vunpack.c.l.b16 %v548
      %v588 = vunpack.c.l.b16 %v549
      %v589 = vunpack.c.l.b16 %v550
      %v590 = vunpack.c.l.b16 %v551
      %v591 = vunpack.c.l.b16 %v552
      %v592 = vunpack.c.l.b16 %v553
      %v593 = vunpack.c.l.b16 %v554
      %v594 = vunpack.c.l.b16 %v555
      %v595 = vunpack.c.l.b16 %v556
      %v596 = vunpack.c.l.b16 %v557
      %v597 = vunpack.c.l.b16 %v558
      %v598 = vpack.c.b16 %v583, %v582
      %v599 = vpack.c.b16 %v585, %v584
      %v600 = vpack.c.b16 %v587, %v586
      %v601 = vpack.c.b16 %v589, %v588
      %v602 = vpack.c.b16 %v591, %v590
      %v603 = vpack.c.b16 %v593, %v592
      %v604 = vpack.c.b16 %v595, %v594
      %v605 = vpack.c.b16 %v597, %v596
      %614 = vmatprep.subr.bf16.mxu0 0
      %615 = vmatpush1.bf16.msra.mxu0 %v598
      %616 = vmatprep.subr.bf16.mxu0 0
      %617 = vmatpush1.bf16.msra.mxu0 %v599
      %618 = vmatprep.subr.bf16.mxu0 0
      %619 = vmatpush1.bf16.msra.mxu0 %v600
      %620 = vmatprep.subr.bf16.mxu0 0
      %621 = vmatpush1.bf16.msra.mxu0 %v601
      %622 = vmatprep.subr.bf16.mxu0 0
      %623 = vmatpush1.bf16.msra.mxu0 %v602
      %624 = vmatprep.subr.bf16.mxu0 0
      %625 = vmatpush1.bf16.msra.mxu0 %v603
      %626 = vmatprep.subr.bf16.mxu0 0
      %627 = vmatpush1.bf16.msra.mxu0 %v604
      %628 = vmatprep.subr.bf16.mxu0 0
      %629 = vmatpush1.bf16.msra.mxu0 %v605
      %630 = vmatprep.subr.bf16.mxu0 0
      %631 = vmatpush1.bf16.msra.mxu0 0
      %632 = vmatprep.subr.bf16.mxu0 0
      %633 = vmatpush1.bf16.msra.mxu0 0
      %634 = vmatprep.subr.bf16.mxu0 0
      %635 = vmatpush1.bf16.msra.mxu0 0
      %636 = vmatprep.subr.bf16.mxu0 0
      %637 = vmatpush1.bf16.msra.mxu0 0
      %638 = vmatprep.subr.bf16.mxu0 0
      %639 = vmatpush1.bf16.msra.mxu0 0
      %640 = vmatprep.subr.bf16.mxu0 0
      %641 = vmatpush1.bf16.msra.mxu0 0
      %642 = vmatprep.subr.bf16.mxu0 0
      %643 = vmatpush1.bf16.msra.mxu0 0
      %644 = vmatprep.subr.bf16.mxu0 0
      %645 = vmatpush1.bf16.msra.mxu0 0
      %646 = vmatprep.mubr.bf16.mxu0 0
      %647 = vmatmul.mubr.bf16.gmra.mrb[0].mxu0 %v535
      %v648 = vpop.f32.mrb[0].mxu0
      %v649 = vadd.f32 %v564, %v648
      %v650 = vpop.f32.mrb[0].mxu0
      %v651 = vpop.f32.mrb[0].mxu0
      %v652 = vadd.f32 %v564, %v651
      %v653 = vpop.f32.mrb[0].mxu0
      %654 = vmatprep.mubr.bf16.mxu0 0
      %655 = vmatmul.mubr.bf16.gmra.mrb[0].mxu0 %v536
      %v656 = vpop.f32.mrb[0].mxu0
      %v657 = vadd.f32 %v564, %v656
      %v658 = vpop.f32.mrb[0].mxu0
      %v659 = vpop.f32.mrb[0].mxu0
      %v660 = vadd.f32 %v564, %v659
      %v661 = vpop.f32.mrb[0].mxu0
      %662 = vmatprep.mubr.bf16.mxu0 0
      %663 = vmatmul.mubr.bf16.gmra.mrb[0].mxu0 %v537
      %v664 = vpop.f32.mrb[0].mxu0
      %v665 = vadd.f32 %v564, %v664
      %v666 = vpop.f32.mrb[0].mxu0
      %v667 = vpop.f32.mrb[0].mxu0
      %v668 = vadd.f32 %v564, %v667
      %v669 = vpop.f32.mrb[0].mxu0
      %670 = vmatprep.mubr.bf16.mxu0 0
      %671 = vmatmul.mubr.bf16.gmra.mrb[0].mxu0 %v538
      %v672 = vpop.f32.mrb[0].mxu0
      %v673 = vadd.f32 %v564, %v672
      %v674 = vpop.f32.mrb[0].mxu0
      %v675 = vpop.f32.mrb[0].mxu0
      %v676 = vadd.f32 %v564, %v675
      %v677 = vpop.f32.mrb[0].mxu0
      %678 = vmatprep.mubr.bf16.mxu0 0
      %679 = vmatmul.mubr.bf16.gmra.mrb[0].mxu0 %v539
      %v680 = vpop.f32.mrb[0].mxu0
      %v681 = vadd.f32 %v564, %v680
      %v682 = vpop.f32.mrb[0].mxu0
      %v683 = vpop.f32.mrb[0].mxu0
      %v684 = vadd.f32 %v564, %v683
      %v685 = vpop.f32.mrb[0].mxu0
      %686 = vmatprep.mubr.bf16.mxu0 0
      %687 = vmatmul.mubr.bf16.gmra.mrb[0].mxu0 %v540
      %v688 = vpop.f32.mrb[0].mxu0
      %v689 = vadd.f32 %v564, %v688
      %v690 = vpop.f32.mrb[0].mxu0
      %v691 = vpop.f32.mrb[0].mxu0
      %v692 = vadd.f32 %v564, %v691
      %v693 = vpop.f32.mrb[0].mxu0
      %694 = vmatprep.mubr.bf16.mxu0 0
      %695 = vmatmul.mubr.bf16.gmra.mrb[0].mxu0 %v541
      %v696 = vpop.f32.mrb[0].mxu0
      %v697 = vadd.f32 %v564, %v696
      %v698 = vpop.f32.mrb[0].mxu0
      %v699 = vpop.f32.mrb[0].mxu0
      %v700 = vadd.f32 %v564, %v699
      %v701 = vpop.f32.mrb[0].mxu0
      %702 = vmatprep.mubr.bf16.mxu0 0
      %703 = vmatmul.mubr.bf16.gmra.mrb[0].mxu0 %v542
      %v704 = vpop.f32.mrb[0].mxu0
      %v705 = vadd.f32 %v564, %v704
      %v706 = vpop.f32.mrb[0].mxu0
      %v707 = vpop.f32.mrb[0].mxu0
      %v708 = vadd.f32 %v564, %v707
      %v709 = vpop.f32.mrb[0].mxu0
      %710 = vdwg.mxu0
      %v711 = vmax.f32 %v649, 0.0
      %v712 = vmax.f32 %v652, 0.0
      %v713 = vmax.f32 %v657, 0.0
      %v714 = vmax.f32 %v660, 0.0
      %v715 = vmax.f32 %v665, 0.0
      %v716 = vmax.f32 %v668, 0.0
      %v717 = vmax.f32 %v673, 0.0
      %v718 = vmax.f32 %v676, 0.0
      %v719 = vmax.f32 %v681, 0.0
      %v720 = vmax.f32 %v684, 0.0
      %v721 = vmax.f32 %v689, 0.0
      %v722 = vmax.f32 %v692, 0.0
      %v723 = vmax.f32 %v697, 0.0
      %v724 = vmax.f32 %v700, 0.0
      %v725 = vmax.f32 %v705, 0.0
      %v726 = vmax.f32 %v708, 0.0
      %v727 = vpack.c.bf16 %v712, %v711
      %v728 = vpack.c.bf16 %v714, %v713
      %v729 = vpack.c.bf16 %v716, %v715
      %v730 = vpack.c.bf16 %v718, %v717
      %v731 = vpack.c.bf16 %v720, %v719
      %v732 = vpack.c.bf16 %v722, %v721
      %v733 = vpack.c.bf16 %v724, %v723
      %v734 = vpack.c.bf16 %v726, %v725
      %v735 = vld [vmem:[%s4] sm:$0xf]
      %v736 = vld [vmem:[%s4 + $0x4] sm:$0xf]
      %v737 = vld [vmem:[%s4 + $0x8] sm:$0xf]
      %v738 = vld [vmem:[%s4 + $0xc] sm:$0xf]
      %v739 = vld [vmem:[%s4 + $0x10] sm:$0xf]
      %v740 = vld [vmem:[%s4 + $0x14] sm:$0xf]
      %v741 = vld [vmem:[%s4 + $0x18] sm:$0xf]
      %v742 = vld [vmem:[%s4 + $0x1c] sm:$0xf]
      %v743 = vld [vmem:[%s4 + $0x20] sm:$0xf]
      %v744 = vld [vmem:[%s4 + $0x24] sm:$0xf]
      %v745 = vld [vmem:[%s4 + $0x28] sm:$0xf]
      %v746 = vld [vmem:[%s4 + $0x2c] sm:$0xf]
      %v747 = vld [vmem:[%s4 + $0x30] sm:$0xf]
      %v748 = vld [vmem:[%s4 + $0x34] sm:$0xf]
      %v749 = vld [vmem:[%s4 + $0x38] sm:$0xf]
      %v750 = vld [vmem:[%s4 + $0x3c] sm:$0xf]
      %v751 = vld [vmem:[%s5] sm:$0x1]
      %v753 = vlaneseq
      %v754 = vshrl.u32 %v753, 7
      %v755 = vsub.s32 0, %v754
      %v756 = vrot.slane %v751, %v755
      %v774 = vunpack.c.l.b16 %v735
      %v775 = vunpack.c.l.b16 %v736
      %v776 = vunpack.c.l.b16 %v737
      %v777 = vunpack.c.l.b16 %v738
      %v778 = vunpack.c.l.b16 %v739
      %v779 = vunpack.c.l.b16 %v740
      %v780 = vunpack.c.l.b16 %v741
      %v781 = vunpack.c.l.b16 %v742
      %v782 = vunpack.c.l.b16 %v743
      %v783 = vunpack.c.l.b16 %v744
      %v784 = vunpack.c.l.b16 %v745
      %v785 = vunpack.c.l.b16 %v746
      %v786 = vunpack.c.l.b16 %v747
      %v787 = vunpack.c.l.b16 %v748
      %v788 = vunpack.c.l.b16 %v749
      %v789 = vunpack.c.l.b16 %v750
      %v790 = vpack.c.b16 %v775, %v774
      %v791 = vpack.c.b16 %v777, %v776
      %v792 = vpack.c.b16 %v779, %v778
      %v793 = vpack.c.b16 %v781, %v780
      %v794 = vpack.c.b16 %v783, %v782
      %v795 = vpack.c.b16 %v785, %v784
      %v796 = vpack.c.b16 %v787, %v786
      %v797 = vpack.c.b16 %v789, %v788
      %806 = vmatprep.subr.bf16.mxu0 0
      %807 = vmatpush1.bf16.msra.mxu0 %v790
      %808 = vmatprep.subr.bf16.mxu0 0
      %809 = vmatpush1.bf16.msra.mxu0 %v791
      %810 = vmatprep.subr.bf16.mxu0 0
      %811 = vmatpush1.bf16.msra.mxu0 %v792
      %812 = vmatprep.subr.bf16.mxu0 0
      %813 = vmatpush1.bf16.msra.mxu0 %v793
      %814 = vmatprep.subr.bf16.mxu0 0
      %815 = vmatpush1.bf16.msra.mxu0 %v794
      %816 = vmatprep.subr.bf16.mxu0 0
      %817 = vmatpush1.bf16.msra.mxu0 %v795
      %818 = vmatprep.subr.bf16.mxu0 0
      %819 = vmatpush1.bf16.msra.mxu0 %v796
      %820 = vmatprep.subr.bf16.mxu0 0
      %821 = vmatpush1.bf16.msra.mxu0 %v797
      %822 = vmatprep.subr.bf16.mxu0 0
      %823 = vmatpush1.bf16.msra.mxu0 0
      %824 = vmatprep.subr.bf16.mxu0 0
      %825 = vmatpush1.bf16.msra.mxu0 0
      %826 = vmatprep.subr.bf16.mxu0 0
      %827 = vmatpush1.bf16.msra.mxu0 0
      %828 = vmatprep.subr.bf16.mxu0 0
      %829 = vmatpush1.bf16.msra.mxu0 0
      %830 = vmatprep.subr.bf16.mxu0 0
      %831 = vmatpush1.bf16.msra.mxu0 0
      %832 = vmatprep.subr.bf16.mxu0 0
      %833 = vmatpush1.bf16.msra.mxu0 0
      %834 = vmatprep.subr.bf16.mxu0 0
      %835 = vmatpush1.bf16.msra.mxu0 0
      %836 = vmatprep.subr.bf16.mxu0 0
      %837 = vmatpush1.bf16.msra.mxu0 0
      %838 = vmatprep.mubr.bf16.mxu0 0
      %839 = vmatmul.mubr.bf16.gmra.mrb[0].mxu0 %v727
      %v840 = vpop.f32.mrb[0].mxu0
      %v841 = vadd.f32 %v756, %v840
      %v842 = vpop.f32.mrb[0].mxu0
      %v843 = vpop.f32.mrb[0].mxu0
      %v844 = vadd.f32 %v756, %v843
      %v845 = vpop.f32.mrb[0].mxu0
      %846 = vmatprep.mubr.bf16.mxu0 0
      %847 = vmatmul.mubr.bf16.gmra.mrb[0].mxu0 %v728
      %v848 = vpop.f32.mrb[0].mxu0
      %v849 = vadd.f32 %v756, %v848
      %v850 = vpop.f32.mrb[0].mxu0
      %v851 = vpop.f32.mrb[0].mxu0
      %v852 = vadd.f32 %v756, %v851
      %v853 = vpop.f32.mrb[0].mxu0
      %854 = vmatprep.mubr.bf16.mxu0 0
      %855 = vmatmul.mubr.bf16.gmra.mrb[0].mxu0 %v729
      %v856 = vpop.f32.mrb[0].mxu0
      %v857 = vadd.f32 %v756, %v856
      %v858 = vpop.f32.mrb[0].mxu0
      %v859 = vpop.f32.mrb[0].mxu0
      %v860 = vadd.f32 %v756, %v859
      %v861 = vpop.f32.mrb[0].mxu0
      %862 = vmatprep.mubr.bf16.mxu0 0
      %863 = vmatmul.mubr.bf16.gmra.mrb[0].mxu0 %v730
      %v864 = vpop.f32.mrb[0].mxu0
      %v865 = vadd.f32 %v756, %v864
      %v866 = vpop.f32.mrb[0].mxu0
      %v867 = vpop.f32.mrb[0].mxu0
      %v868 = vadd.f32 %v756, %v867
      %v869 = vpop.f32.mrb[0].mxu0
      %870 = vmatprep.mubr.bf16.mxu0 0
      %871 = vmatmul.mubr.bf16.gmra.mrb[0].mxu0 %v731
      %v872 = vpop.f32.mrb[0].mxu0
      %v873 = vadd.f32 %v756, %v872
      %v874 = vpop.f32.mrb[0].mxu0
      %v875 = vpop.f32.mrb[0].mxu0
      %v876 = vadd.f32 %v756, %v875
      %v877 = vpop.f32.mrb[0].mxu0
      %878 = vmatprep.mubr.bf16.mxu0 0
      %879 = vmatmul.mubr.bf16.gmra.mrb[0].mxu0 %v732
      %v880 = vpop.f32.mrb[0].mxu0
      %v881 = vadd.f32 %v756, %v880
      %v882 = vpop.f32.mrb[0].mxu0
      %v883 = vpop.f32.mrb[0].mxu0
      %v884 = vadd.f32 %v756, %v883
      %v885 = vpop.f32.mrb[0].mxu0
      %886 = vmatprep.mubr.bf16.mxu0 0
      %887 = vmatmul.mubr.bf16.gmra.mrb[0].mxu0 %v733
      %v888 = vpop.f32.mrb[0].mxu0
      %v889 = vadd.f32 %v756, %v888
      %v890 = vpop.f32.mrb[0].mxu0
      %v891 = vpop.f32.mrb[0].mxu0
      %v892 = vadd.f32 %v756, %v891
      %v893 = vpop.f32.mrb[0].mxu0
      %894 = vmatprep.mubr.bf16.mxu0 0
      %895 = vmatmul.mubr.bf16.gmra.mrb[0].mxu0 %v734
      %v896 = vpop.f32.mrb[0].mxu0
      %v897 = vadd.f32 %v756, %v896
      %v898 = vpop.f32.mrb[0].mxu0
      %v899 = vpop.f32.mrb[0].mxu0
      %v900 = vadd.f32 %v756, %v899
      %v901 = vpop.f32.mrb[0].mxu0
      %902 = vdwg.mxu0
      %v903 = vmax.f32 %v841, 0.0
      %v904 = vmax.f32 %v844, 0.0
      %v905 = vmax.f32 %v849, 0.0
      %v906 = vmax.f32 %v852, 0.0
      %v907 = vmax.f32 %v857, 0.0
      %v908 = vmax.f32 %v860, 0.0
      %v909 = vmax.f32 %v865, 0.0
      %v910 = vmax.f32 %v868, 0.0
      %v911 = vmax.f32 %v873, 0.0
      %v912 = vmax.f32 %v876, 0.0
      %v913 = vmax.f32 %v881, 0.0
      %v914 = vmax.f32 %v884, 0.0
      %v915 = vmax.f32 %v889, 0.0
      %v916 = vmax.f32 %v892, 0.0
      %v917 = vmax.f32 %v897, 0.0
      %v918 = vmax.f32 %v900, 0.0
      %v919 = vpack.c.bf16 %v904, %v903
      %v920 = vpack.c.bf16 %v906, %v905
      %v921 = vpack.c.bf16 %v908, %v907
      %v922 = vpack.c.bf16 %v910, %v909
      %v923 = vpack.c.bf16 %v912, %v911
      %v924 = vpack.c.bf16 %v914, %v913
      %v925 = vpack.c.bf16 %v916, %v915
      %v926 = vpack.c.bf16 %v918, %v917
      %v927 = vld [vmem:[%s6] sm:$0xf]
      %v928 = vld [vmem:[%s6 + $0x4] sm:$0xf]
      %v929 = vld [vmem:[%s6 + $0x8] sm:$0xf]
      %v930 = vld [vmem:[%s6 + $0xc] sm:$0xf]
      %v931 = vld [vmem:[%s6 + $0x10] sm:$0xf]
      %v932 = vld [vmem:[%s6 + $0x14] sm:$0xf]
      %v933 = vld [vmem:[%s6 + $0x18] sm:$0xf]
      %v934 = vld [vmem:[%s6 + $0x1c] sm:$0xf]
      %v935 = vld [vmem:[%s6 + $0x20] sm:$0xf]
      %v936 = vld [vmem:[%s6 + $0x24] sm:$0xf]
      %v937 = vld [vmem:[%s6 + $0x28] sm:$0xf]
      %v938 = vld [vmem:[%s6 + $0x2c] sm:$0xf]
      %v939 = vld [vmem:[%s6 + $0x30] sm:$0xf]
      %v940 = vld [vmem:[%s6 + $0x34] sm:$0xf]
      %v941 = vld [vmem:[%s6 + $0x38] sm:$0xf]
      %v942 = vld [vmem:[%s6 + $0x3c] sm:$0xf]
      %v943 = vld [vmem:[%s7] sm:$0x1]
      %v945 = vlaneseq
      %v946 = vshrl.u32 %v945, 7
      %v947 = vsub.s32 0, %v946
      %v948 = vrot.slane %v943, %v947
      %v966 = vunpack.c.l.b16 %v927
      %v967 = vunpack.c.l.b16 %v928
      %v968 = vunpack.c.l.b16 %v929
      %v969 = vunpack.c.l.b16 %v930
      %v970 = vunpack.c.l.b16 %v931
      %v971 = vunpack.c.l.b16 %v932
      %v972 = vunpack.c.l.b16 %v933
      %v973 = vunpack.c.l.b16 %v934
      %v974 = vunpack.c.l.b16 %v935
      %v975 = vunpack.c.l.b16 %v936
      %v976 = vunpack.c.l.b16 %v937
      %v977 = vunpack.c.l.b16 %v938
      %v978 = vunpack.c.l.b16 %v939
      %v979 = vunpack.c.l.b16 %v940
      %v980 = vunpack.c.l.b16 %v941
      %v981 = vunpack.c.l.b16 %v942
      %v982 = vpack.c.b16 %v967, %v966
      %v983 = vpack.c.b16 %v969, %v968
      %v984 = vpack.c.b16 %v971, %v970
      %v985 = vpack.c.b16 %v973, %v972
      %v986 = vpack.c.b16 %v975, %v974
      %v987 = vpack.c.b16 %v977, %v976
      %v988 = vpack.c.b16 %v979, %v978
      %v989 = vpack.c.b16 %v981, %v980
      %998 = vmatprep.subr.bf16.mxu0 0
      %999 = vmatpush1.bf16.msra.mxu0 %v982
      %1000 = vmatprep.subr.bf16.mxu0 0
      %1001 = vmatpush1.bf16.msra.mxu0 %v983
      %1002 = vmatprep.subr.bf16.mxu0 0
      %1003 = vmatpush1.bf16.msra.mxu0 %v984
      %1004 = vmatprep.subr.bf16.mxu0 0
      %1005 = vmatpush1.bf16.msra.mxu0 %v985
      %1006 = vmatprep.subr.bf16.mxu0 0
      %1007 = vmatpush1.bf16.msra.mxu0 %v986
      %1008 = vmatprep.subr.bf16.mxu0 0
      %1009 = vmatpush1.bf16.msra.mxu0 %v987
      %1010 = vmatprep.subr.bf16.mxu0 0
      %1011 = vmatpush1.bf16.msra.mxu0 %v988
      %1012 = vmatprep.subr.bf16.mxu0 0
      %1013 = vmatpush1.bf16.msra.mxu0 %v989
      %1014 = vmatprep.subr.bf16.mxu0 0
      %1015 = vmatpush1.bf16.msra.mxu0 0
      %1016 = vmatprep.subr.bf16.mxu0 0
      %1017 = vmatpush1.bf16.msra.mxu0 0
      %1018 = vmatprep.subr.bf16.mxu0 0
      %1019 = vmatpush1.bf16.msra.mxu0 0
      %1020 = vmatprep.subr.bf16.mxu0 0
      %1021 = vmatpush1.bf16.msra.mxu0 0
      %1022 = vmatprep.subr.bf16.mxu0 0
      %1023 = vmatpush1.bf16.msra.mxu0 0
      %1024 = vmatprep.subr.bf16.mxu0 0
      %1025 = vmatpush1.bf16.msra.mxu0 0
      %1026 = vmatprep.subr.bf16.mxu0 0
      %1027 = vmatpush1.bf16.msra.mxu0 0
      %1028 = vmatprep.subr.bf16.mxu0 0
      %1029 = vmatpush1.bf16.msra.mxu0 0
      %1030 = vmatprep.mubr.bf16.mxu0 0
      %1031 = vmatmul.mubr.bf16.gmra.mrb[0].mxu0 %v919
      %v1032 = vpop.f32.mrb[0].mxu0
      %v1033 = vadd.f32 %v948, %v1032
      %v1034 = vpop.f32.mrb[0].mxu0
      %v1035 = vpop.f32.mrb[0].mxu0
      %v1036 = vadd.f32 %v948, %v1035
      %v1037 = vpop.f32.mrb[0].mxu0
      %1038 = vmatprep.mubr.bf16.mxu0 0
      %1039 = vmatmul.mubr.bf16.gmra.mrb[0].mxu0 %v920
      %v1040 = vpop.f32.mrb[0].mxu0
      %v1041 = vadd.f32 %v948, %v1040
      %v1042 = vpop.f32.mrb[0].mxu0
      %v1043 = vpop.f32.mrb[0].mxu0
      %v1044 = vadd.f32 %v948, %v1043
      %v1045 = vpop.f32.mrb[0].mxu0
      %1046 = vmatprep.mubr.bf16.mxu0 0
      %1047 = vmatmul.mubr.bf16.gmra.mrb[0].mxu0 %v921
      %v1048 = vpop.f32.mrb[0].mxu0
      %v1049 = vadd.f32 %v948, %v1048
      %v1050 = vpop.f32.mrb[0].mxu0
      %v1051 = vpop.f32.mrb[0].mxu0
      %v1052 = vadd.f32 %v948, %v1051
      %v1053 = vpop.f32.mrb[0].mxu0
      %1054 = vmatprep.mubr.bf16.mxu0 0
      %1055 = vmatmul.mubr.bf16.gmra.mrb[0].mxu0 %v922
      %v1056 = vpop.f32.mrb[0].mxu0
      %v1057 = vadd.f32 %v948, %v1056
      %v1058 = vpop.f32.mrb[0].mxu0
      %v1059 = vpop.f32.mrb[0].mxu0
      %v1060 = vadd.f32 %v948, %v1059
      %v1061 = vpop.f32.mrb[0].mxu0
      %1062 = vmatprep.mubr.bf16.mxu0 0
      %1063 = vmatmul.mubr.bf16.gmra.mrb[0].mxu0 %v923
      %v1064 = vpop.f32.mrb[0].mxu0
      %v1065 = vadd.f32 %v948, %v1064
      %v1066 = vpop.f32.mrb[0].mxu0
      %v1067 = vpop.f32.mrb[0].mxu0
      %v1068 = vadd.f32 %v948, %v1067
      %v1069 = vpop.f32.mrb[0].mxu0
      %1070 = vmatprep.mubr.bf16.mxu0 0
      %1071 = vmatmul.mubr.bf16.gmra.mrb[0].mxu0 %v924
      %v1072 = vpop.f32.mrb[0].mxu0
      %v1073 = vadd.f32 %v948, %v1072
      %v1074 = vpop.f32.mrb[0].mxu0
      %v1075 = vpop.f32.mrb[0].mxu0
      %v1076 = vadd.f32 %v948, %v1075
      %v1077 = vpop.f32.mrb[0].mxu0
      %1078 = vmatprep.mubr.bf16.mxu0 0
      %1079 = vmatmul.mubr.bf16.gmra.mrb[0].mxu0 %v925
      %v1080 = vpop.f32.mrb[0].mxu0
      %v1081 = vadd.f32 %v948, %v1080
      %v1082 = vpop.f32.mrb[0].mxu0
      %v1083 = vpop.f32.mrb[0].mxu0
      %v1084 = vadd.f32 %v948, %v1083
      %v1085 = vpop.f32.mrb[0].mxu0
      %1086 = vmatprep.mubr.bf16.mxu0 0
      %1087 = vmatmul.mubr.bf16.gmra.mrb[0].mxu0 %v926
      %v1088 = vpop.f32.mrb[0].mxu0
      %v1089 = vadd.f32 %v948, %v1088
      %v1090 = vpop.f32.mrb[0].mxu0
      %v1091 = vpop.f32.mrb[0].mxu0
      %v1092 = vadd.f32 %v948, %v1091
      %v1093 = vpop.f32.mrb[0].mxu0
      %1094 = vdwg.mxu0
      %1095 = vmax.xlane.f32.xlu0 %v1033
      %v1096 = vpop.xlane.xlu0 %1095
      %1097 = vmax.xlane.f32.xlu0 %v1036
      %v1098 = vpop.xlane.xlu0 %1097
      %1099 = vmax.xlane.f32.xlu0 %v1041
      %v1100 = vpop.xlane.xlu0 %1099
      %1101 = vmax.xlane.f32.xlu0 %v1044
      %v1102 = vpop.xlane.xlu0 %1101
      %1103 = vmax.xlane.f32.xlu0 %v1049
      %v1104 = vpop.xlane.xlu0 %1103
      %1105 = vmax.xlane.f32.xlu0 %v1052
      %v1106 = vpop.xlane.xlu0 %1105
      %1107 = vmax.xlane.f32.xlu0 %v1057
      %v1108 = vpop.xlane.xlu0 %1107
      %1109 = vmax.xlane.f32.xlu0 %v1060
      %v1110 = vpop.xlane.xlu0 %1109
      %1111 = vmax.xlane.f32.xlu0 %v1065
      %v1112 = vpop.xlane.xlu0 %1111
      %1113 = vmax.xlane.f32.xlu0 %v1068
      %v1114 = vpop.xlane.xlu0 %1113
      %1115 = vmax.xlane.f32.xlu0 %v1073
      %v1116 = vpop.xlane.xlu0 %1115
      %1117 = vmax.xlane.f32.xlu0 %v1076
      %v1118 = vpop.xlane.xlu0 %1117
      %1119 = vmax.xlane.f32.xlu0 %v1081
      %v1120 = vpop.xlane.xlu0 %1119
      %1121 = vmax.xlane.f32.xlu0 %v1084
      %v1122 = vpop.xlane.xlu0 %1121
      %1123 = vmax.xlane.f32.xlu0 %v1089
      %v1124 = vpop.xlane.xlu0 %1123
      %1125 = vmax.xlane.f32.xlu0 %v1092
      %v1126 = vpop.xlane.xlu0 %1125
      %v1127 = vsub.f32 %v1033, %v1096
      %v1128 = vsub.f32 %v1036, %v1098
      %v1129 = vsub.f32 %v1041, %v1100
      %v1130 = vsub.f32 %v1044, %v1102
      %v1131 = vsub.f32 %v1049, %v1104
      %v1132 = vsub.f32 %v1052, %v1106
      %v1133 = vsub.f32 %v1057, %v1108
      %v1134 = vsub.f32 %v1060, %v1110
      %v1135 = vsub.f32 %v1065, %v1112
      %v1136 = vsub.f32 %v1068, %v1114
      %v1137 = vsub.f32 %v1073, %v1116
      %v1138 = vsub.f32 %v1076, %v1118
      %v1139 = vsub.f32 %v1081, %v1120
      %v1140 = vsub.f32 %v1084, %v1122
      %v1141 = vsub.f32 %v1089, %v1124
      %v1142 = vsub.f32 %v1092, %v1126
      %v1143 = vmul.f32 %v1127, 1.442695
      %v1144 = vpow.pop %v1143
      %v1145 = vmul.f32 %v1128, 1.442695
      %v1146 = vpow.pop %v1145
      %v1147 = vmul.f32 %v1129, 1.442695
      %v1148 = vpow.pop %v1147
      %v1149 = vmul.f32 %v1130, 1.442695
      %v1150 = vpow.pop %v1149
      %v1151 = vmul.f32 %v1131, 1.442695
      %v1152 = vpow.pop %v1151
      %v1153 = vmul.f32 %v1132, 1.442695
      %v1154 = vpow.pop %v1153
      %v1155 = vmul.f32 %v1133, 1.442695
      %v1156 = vpow.pop %v1155
      %v1157 = vmul.f32 %v1134, 1.442695
      %v1158 = vpow.pop %v1157
      %v1159 = vmul.f32 %v1135, 1.442695
      %v1160 = vpow.pop %v1159
      %v1161 = vmul.f32 %v1136, 1.442695
      %v1162 = vpow.pop %v1161
      %v1163 = vmul.f32 %v1137, 1.442695
      %v1164 = vpow.pop %v1163
      %v1165 = vmul.f32 %v1138, 1.442695
      %v1166 = vpow.pop %v1165
      %v1167 = vmul.f32 %v1139, 1.442695
      %v1168 = vpow.pop %v1167
      %v1169 = vmul.f32 %v1140, 1.442695
      %v1170 = vpow.pop %v1169
      %v1171 = vmul.f32 %v1141, 1.442695
      %v1172 = vpow.pop %v1171
      %v1173 = vmul.f32 %v1142, 1.442695
      %v1174 = vpow.pop %v1173
      %1175 = vadd.xlane.f32.xlu0 %v1144
      %v1176 = vpop.xlane.xlu0 %1175
      %1177 = vadd.xlane.f32.xlu0 %v1146
      %v1178 = vpop.xlane.xlu0 %1177
      %1179 = vadd.xlane.f32.xlu0 %v1148
      %v1180 = vpop.xlane.xlu0 %1179
      %1181 = vadd.xlane.f32.xlu0 %v1150
      %v1182 = vpop.xlane.xlu0 %1181
      %1183 = vadd.xlane.f32.xlu0 %v1152
      %v1184 = vpop.xlane.xlu0 %1183
      %1185 = vadd.xlane.f32.xlu0 %v1154
      %v1186 = vpop.xlane.xlu0 %1185
      %1187 = vadd.xlane.f32.xlu0 %v1156
      %v1188 = vpop.xlane.xlu0 %1187
      %1189 = vadd.xlane.f32.xlu0 %v1158
      %v1190 = vpop.xlane.xlu0 %1189
      %1191 = vadd.xlane.f32.xlu0 %v1160
      %v1192 = vpop.xlane.xlu0 %1191
      %1193 = vadd.xlane.f32.xlu0 %v1162
      %v1194 = vpop.xlane.xlu0 %1193
      %1195 = vadd.xlane.f32.xlu0 %v1164
      %v1196 = vpop.xlane.xlu0 %1195
      %1197 = vadd.xlane.f32.xlu0 %v1166
      %v1198 = vpop.xlane.xlu0 %1197
      %1199 = vadd.xlane.f32.xlu0 %v1168
      %v1200 = vpop.xlane.xlu0 %1199
      %1201 = vadd.xlane.f32.xlu0 %v1170
      %v1202 = vpop.xlane.xlu0 %1201
      %1203 = vadd.xlane.f32.xlu0 %v1172
      %v1204 = vpop.xlane.xlu0 %1203
      %1205 = vadd.xlane.f32.xlu0 %v1174
      %v1206 = vpop.xlane.xlu0 %1205
      %v1207 = vlog2.pop %v1176
      %v1208 = vmul.f32 %v1207, 0.6931472
      %v1209 = vlog2.pop %v1178
      %v1210 = vmul.f32 %v1209, 0.6931472
      %v1211 = vlog2.pop %v1180
      %v1212 = vmul.f32 %v1211, 0.6931472
      %v1213 = vlog2.pop %v1182
      %v1214 = vmul.f32 %v1213, 0.6931472
      %v1215 = vlog2.pop %v1184
      %v1216 = vmul.f32 %v1215, 0.6931472
      %v1217 = vlog2.pop %v1186
      %v1218 = vmul.f32 %v1217, 0.6931472
      %v1219 = vlog2.pop %v1188
      %v1220 = vmul.f32 %v1219, 0.6931472
      %v1221 = vlog2.pop %v1190
      %v1222 = vmul.f32 %v1221, 0.6931472
      %v1223 = vlog2.pop %v1192
      %v1224 = vmul.f32 %v1223, 0.6931472
      %v1225 = vlog2.pop %v1194
      %v1226 = vmul.f32 %v1225, 0.6931472
      %v1227 = vlog2.pop %v1196
      %v1228 = vmul.f32 %v1227, 0.6931472
      %v1229 = vlog2.pop %v1198
      %v1230 = vmul.f32 %v1229, 0.6931472
      %v1231 = vlog2.pop %v1200
      %v1232 = vmul.f32 %v1231, 0.6931472
      %v1233 = vlog2.pop %v1202
      %v1234 = vmul.f32 %v1233, 0.6931472
      %v1235 = vlog2.pop %v1204
      %v1236 = vmul.f32 %v1235, 0.6931472
      %v1237 = vlog2.pop %v1206
      %v1238 = vmul.f32 %v1237, 0.6931472
      %v1239 = vadd.f32 %v1208, %v1096
      %v1240 = vadd.f32 %v1210, %v1098
      %v1241 = vadd.f32 %v1212, %v1100
      %v1242 = vadd.f32 %v1214, %v1102
      %v1243 = vadd.f32 %v1216, %v1104
      %v1244 = vadd.f32 %v1218, %v1106
      %v1245 = vadd.f32 %v1220, %v1108
      %v1246 = vadd.f32 %v1222, %v1110
      %v1247 = vadd.f32 %v1224, %v1112
      %v1248 = vadd.f32 %v1226, %v1114
      %v1249 = vadd.f32 %v1228, %v1116
      %v1250 = vadd.f32 %v1230, %v1118
      %v1251 = vadd.f32 %v1232, %v1120
      %v1252 = vadd.f32 %v1234, %v1122
      %v1253 = vadd.f32 %v1236, %v1124
      %v1254 = vadd.f32 %v1238, %v1126
      %v1255 = vsub.f32 %v1033, %v1239
      %v1256 = vsub.f32 %v1036, %v1240
      %v1257 = vsub.f32 %v1041, %v1241
      %v1258 = vsub.f32 %v1044, %v1242
      %v1259 = vsub.f32 %v1049, %v1243
      %v1260 = vsub.f32 %v1052, %v1244
      %v1261 = vsub.f32 %v1057, %v1245
      %v1262 = vsub.f32 %v1060, %v1246
      %v1263 = vsub.f32 %v1065, %v1247
      %v1264 = vsub.f32 %v1068, %v1248
      %v1265 = vsub.f32 %v1073, %v1249
      %v1266 = vsub.f32 %v1076, %v1250
      %v1267 = vsub.f32 %v1081, %v1251
      %v1268 = vsub.f32 %v1084, %v1252
      %v1269 = vsub.f32 %v1089, %v1253
      %v1270 = vsub.f32 %v1092, %v1254
      %1271 = vst [vmem:[%s307] sm:$0xff] %v1255
      %1272 = vst [vmem:[%s307 + $0x8] sm:$0xff] %v1256
      %1273 = vst [vmem:[%s307 + $0x10] sm:$0xff] %v1257
      %1274 = vst [vmem:[%s307 + $0x18] sm:$0xff] %v1258
      %1275 = vst [vmem:[%s307 + $0x20] sm:$0xff] %v1259
      %1276 = vst [vmem:[%s307 + $0x28] sm:$0xff] %v1260
      %1277 = vst [vmem:[%s307 + $0x30] sm:$0xff] %v1261
      %1278 = vst [vmem:[%s307 + $0x38] sm:$0xff] %v1262
      %1279 = vst [vmem:[%s307 + $0x40] sm:$0xff] %v1263
      %1280 = vst [vmem:[%s307 + $0x48] sm:$0xff] %v1264
      %1281 = vst [vmem:[%s307 + $0x50] sm:$0xff] %v1265
      %1282 = vst [vmem:[%s307 + $0x58] sm:$0xff] %v1266
      %1283 = vst [vmem:[%s307 + $0x60] sm:$0xff] %v1267
      %1284 = vst [vmem:[%s307 + $0x68] sm:$0xff] %v1268
      %1285 = vst [vmem:[%s307 + $0x70] sm:$0xff] %v1269
      %1286 = vst [vmem:[%s307 + $0x78] sm:$0xff] %v1270
      %s1287 = smul.u32 16, %s19
      %p1288 = scmp.lt.s32.totalorder %s1287, 31
      %s1289 = scalar_select %p1288, %s1287, 31
      %s1290 = smul.addr %s1289, 8
      %s1291 = scalar_lea.vmem %s8, %s1290
      // Predicated region
      $region53: #{feedforward_forward.1} parent=51 // pred_check
        %p1292 = pneg %p210
      $region54: #{feedforward_forward.1} parent=51 // pred_check_branch
        %1294 = sbr.rel (%p1292) target = $region56
      $region55: #{feedforward_forward.1} parent=51 // pred_region
        %s1295 = smul.u32 16, %s19
      $region56: #{feedforward_forward.1} parent=51 // pred_fallthru
        _
    $region52: #{feedforward_forward.1} parent=5 // pred_fallthru
      _
    %p1296 = scmp.le.s32.totalorder 2, %s14
    // Predicated region
    $region57: #{feedforward_forward.1} parent=5 // pred_check
      %p1297 = pneg %p1296
    $region58: #{feedforward_forward.1} parent=5 // pred_check_branch
      %1299 = sbr.rel (%p1297) target = $region60
    $region59: #{feedforward_forward.1} parent=5 // pred_region
      %s1300 = ssub.s32 %s14, 2
      // Predicated region
      $region61: #{feedforward_forward.1} parent=59 // pred_check
        %p1301 = pneg %p216
      $region62: #{feedforward_forward.1} parent=59 // pred_check_branch
        %1303 = sbr.rel (%p1301) target = $region64
      $region63: #{feedforward_forward.1} parent=59 // pred_region
        %s1304 = smul.u32 16, %s20
        %p1305 = scmp.lt.s32.totalorder %s1304, 31
        %s1306 = scalar_select %p1305, %s1304, 31
        %s1307 = smul.addr %s1306, 8
        %s1308 = scalar_lea.vmem %s8, %s1307
      $region64: #{feedforward_forward.1} parent=59 // pred_fallthru
        _
    $region60: #{feedforward_forward.1} parent=5 // pred_fallthru
      _
  $region6: #{feedforward_forward.1} parent=0 // loop_footer
    %s18 = sadd.s32 1, %s14
  $region7: #{feedforward_forward.1} parent=0 // loop_footer_branch
    %13 = sbr.rel target = $region3
  $region8: #{feedforward_forward.1} parent=0 // loop_exit
    _

</llo_original>
